<compile_context>
chip_gen: v7x
topology: tpu7x:2x2x1
jax: 0.10.0
libtpu: 0.0.40
codegen_flags: <defaults>
</compile_context>

<pallas_src>
import jax
import jax.numpy as jnp
from jax.experimental import pallas as pl
from jax.experimental.pallas import tpu as pltpu


def _round_up(x, m):
    return (x + m - 1) // m * m


def _pick_block_batch(B, S, target_rows=512):
    """Largest divisor of B with Bb*S <= target_rows, keeping >=2 grid steps."""
    cap = max(1, target_rows // max(S, 1))
    if B >= 2:
        cap = min(cap, B // 2)  # >=2 grid steps -> both v7x TensorCores busy
    bb = max(1, min(B, cap))
    while B % bb:
        bb -= 1
    return bb


def _context_layer_kernel(x_ref, w_ref, b_ref, o_ref, slab_ref):
    # x_ref   : (Bb, S, D)    compute dtype (bf16)  -- Bb sentences
    # w_ref   : (5*D, 3*Cp)   compute dtype (bf16)  -- packed im2col weights
    # b_ref   : (1, 3*Cp)     f32                   -- packed biases
    # o_ref   : (Bb, S, Cp)   f32                   -- output block
    # slab_ref: (Bb*S, 5*D)   compute dtype (bf16)  -- im2col slab (VMEM scratch)
    Bb, S, D = x_ref.shape
    Cp = o_ref.shape[-1]

    # Zero the slab so halo positions (never written below) contribute 0.
    # Done every step (scratch persists across grid steps / per-core on v7x).
    slab_ref[...] = jnp.zeros_like(slab_ref)

    # im2col: column group j (j = 0..4) holds x[t + j - 2], per sentence.
    for b in range(Bb):
        xb = x_ref[b]                                             # (S, D)
        r0 = b * S
        slab_ref[r0:r0 + S, 2 * D:3 * D] = xb                     # offset  0
        if S > 1:
            slab_ref[r0 + 1:r0 + S, 1 * D:2 * D] = xb[:S - 1, :]  # offset -1
            slab_ref[r0:r0 + S - 1, 3 * D:4 * D] = xb[1:, :]      # offset +1
        if S > 2:
            slab_ref[r0 + 2:r0 + S, 0 * D:1 * D] = xb[:S - 2, :]  # offset -2
            slab_ref[r0:r0 + S - 2, 4 * D:5 * D] = xb[2:, :]      # offset +2

    # One fused MXU matmul for all three convolutions (f32 accumulation),
    # biases added per branch before the max.
    y = jnp.dot(slab_ref[...], w_ref[...],
                preferred_element_type=jnp.float32) + b_ref[...]   # (Bb*S, 3*Cp)

    # max over the three branches, then a single tanh (tanh is monotonic, so
    # max(tanh(a), tanh(b), tanh(c)) == tanh(max(a, b, c))).
    pre = jnp.maximum(jnp.maximum(y[:, 0:Cp], y[:, Cp:2 * Cp]), y[:, 2 * Cp:3 * Cp])
    z = jnp.tanh(pre).astype(o_ref.dtype)                          # (Bb*S, Cp)

    for b in range(Bb):
        o_ref[b] = z[b * S:(b + 1) * S, :]


def context_layer(x, w1, w3, w5, bias, *, compute_dtype=jnp.bfloat16,
                  target_rows=512):
    """x: (B, S, D); w1: (D, C); w3: (3, D, C); w5: (5, D, C); bias: (3, C)."""
    B, S, D = x.shape
    C = w1.shape[1]
    Cp = _round_up(C, 128)              # lane-dense output channel count
    Bb = _pick_block_batch(B, S, target_rows)

    f32 = jnp.float32
    # Pack the three convs into a single (5*D, 3*Cp) im2col weight matrix.
    # Tap j multiplies x[t + j - 2].
    w_packed = jnp.zeros((5 * D, 3 * Cp), f32)
    w_packed = w_packed.at[2 * D:3 * D, 0:C].set(w1.astype(f32))            # conv1
    for k in range(3):                                                      # conv3
        w_packed = w_packed.at[(k + 1) * D:(k + 2) * D, Cp:Cp + C].set(
            w3[k].astype(f32))
    for k in range(5):                                                      # conv5
        w_packed = w_packed.at[k * D:(k + 1) * D, 2 * Cp:2 * Cp + C].set(
            w5[k].astype(f32))
    w_packed = w_packed.astype(compute_dtype)

    b_packed = jnp.zeros((1, 3 * Cp), f32)
    b_packed = b_packed.at[0, 0:C].set(bias[0].astype(f32))
    b_packed = b_packed.at[0, Cp:Cp + C].set(bias[1].astype(f32))
    b_packed = b_packed.at[0, 2 * Cp:2 * Cp + C].set(bias[2].astype(f32))

    x_c = x.astype(compute_dtype)

    out = pl.pallas_call(
        _context_layer_kernel,
        out_shape=jax.ShapeDtypeStruct((B, S, Cp), jnp.float32),
        grid_spec=pltpu.PrefetchScalarGridSpec(
            num_scalar_prefetch=0,
            grid=(B // Bb,),
            in_specs=[
                pl.BlockSpec((Bb, S, D), lambda i: (i, 0, 0)),
                pl.BlockSpec((5 * D, 3 * Cp), lambda i: (0, 0)),
                pl.BlockSpec((1, 3 * Cp), lambda i: (0, 0)),
            ],
            out_specs=pl.BlockSpec((Bb, S, Cp), lambda i: (i, 0, 0)),
            scratch_shapes=[pltpu.VMEM((Bb * S, 5 * D), compute_dtype)],
        ),
        compiler_params=pltpu.CompilerParams(
            dimension_semantics=("parallel",),
            vmem_limit_bytes=48 * 1024 * 1024),
    )(x_c, w_packed, b_packed)

    return out[:, :, :C]


def context_layer_ref(x, w1, w3, w5, bias):
    """Pure-JAX f32 reference of the PyTorch forward (tanh before max)."""
    B, S, D = x.shape
    xp = jnp.pad(x, ((0, 0), (2, 2), (0, 0)))
    y1 = jnp.tanh(jnp.einsum('bsd,dc->bsc', xp[:, 2:2 + S], w1) + bias[0])
    y3 = jnp.tanh(sum(jnp.einsum('bsd,dc->bsc', xp[:, 1 + k:1 + k + S], w3[k])
                      for k in range(3)) + bias[1])
    y5 = jnp.tanh(sum(jnp.einsum('bsd,dc->bsc', xp[:, k:k + S], w5[k])
                      for k in range(5)) + bias[2])
    return jnp.maximum(jnp.maximum(y1, y3), y5)


if __name__ == "__main__":
    # Small shapes consistent with the module (in_channels=1, out_channels=C,
    # kernel_dim = D = word_embed_size).
    B, S, D, C = 8, 16, 64, 64

    key = jax.random.PRNGKey(0)
    kx, k1, k3, k5, kb = jax.random.split(key, 5)

    x = jax.random.normal(kx, (B, S, D), dtype=jnp.float32)

    # PyTorch Conv2d weights have shape (C, 1, kH, D); stored pre-transposed
    # here as (kH, D, C) (and (D, C) for the 1-tap conv).
    scale = 0.1
    w1 = scale * jax.random.normal(k1, (D, C), dtype=jnp.float32)
    w3 = scale * jax.random.normal(k3, (3, D, C), dtype=jnp.float32)
    w5 = scale * jax.random.normal(k5, (5, D, C), dtype=jnp.float32)
    bias = scale * jax.random.normal(kb, (3, C), dtype=jnp.float32)

    out = jax.block_until_ready(context_layer(x, w1, w3, w5, bias))
    ref = context_layer_ref(x, w1, w3, w5, bias)

    assert out.shape == (B, S, C), out.shape
    # bf16 MXU inputs -> loosened tolerance vs the f32 reference.
    assert jnp.allclose(out, ref, atol=5e-2, rtol=5e-2), (
        "mismatch vs reference, max abs err = %g" % float(jnp.max(jnp.abs(out - ref))))

    print("KERNEL_OK")
</pallas_src>

<mosaic_0001>
module attributes {stable_mosaic.version = 11 : i64} {
  func.func @_context_layer_kernel(%arg0: i32, %arg1: memref<4x16x64xbf16, #tpu.memory_space<vmem>>, %arg2: memref<320x384xbf16, #tpu.memory_space<vmem>>, %arg3: memref<1x384xf32, #tpu.memory_space<vmem>>, %arg4: memref<4x16x128xf32, #tpu.memory_space<vmem>>, %arg5: memref<64x320xbf16, #tpu.memory_space<vmem>>) attributes {dimension_semantics = [#tpu.dimension_semantics<parallel>], iteration_bounds = array<i64: 2>, scalar_prefetch = 0 : i64, scratch_operands = 1 : i64, tpu.core_type = #tpu.core_type<tc>, window_params = [{transform_indices = @transform_0, window_bounds = array<i64: 4, 16, 64>}, {pipeline_mode = #tpu.pipeline_mode<synchronous>, transform_indices = @transform_1, window_bounds = array<i64: 320, 384>}, {pipeline_mode = #tpu.pipeline_mode<synchronous>, transform_indices = @transform_2, window_bounds = array<i64: 1, 384>}, {transform_indices = @transform_3, window_bounds = array<i64: 4, 16, 128>}]} {
    %cst = arith.constant 0.000000e+00 : bf16
    %0 = vector.broadcast %cst : bf16 to vector<64x320xbf16>
    %c0 = arith.constant 0 : index
    %c0_0 = arith.constant 0 : index
    %1 = vector.load %arg5[%c0, %c0_0] : memref<64x320xbf16, #tpu.memory_space<vmem>>, vector<64x320xbf16>
    tpu.vector_store %arg5[%c0, %c0_0], %0 {strides = array<i32>} : memref<64x320xbf16, #tpu.memory_space<vmem>>, vector<64x320xbf16>,
    %c0_1 = arith.constant 0 : index
    %c0_2 = arith.constant 0 : index
    %c0_3 = arith.constant 0 : index
    %2 = vector.load %arg1[%c0_1, %c0_2, %c0_3] : memref<4x16x64xbf16, #tpu.memory_space<vmem>>, vector<1x16x64xbf16>
    %3 = vector.shape_cast %2 : vector<1x16x64xbf16> to vector<16x64xbf16>
    %c0_4 = arith.constant 0 : index
    %c128 = arith.constant 128 : index
    %4 = vector.load %arg5[%c0_4, %c128] : memref<64x320xbf16, #tpu.memory_space<vmem>>, vector<16x64xbf16>
    tpu.vector_store %arg5[%c0_4, %c128], %3 {strides = array<i32>} : memref<64x320xbf16, #tpu.memory_space<vmem>>, vector<16x64xbf16>,
    %5 = vector.extract_strided_slice %3 {offsets = [0, 0], sizes = [15, 64], strides = [1, 1]} : vector<16x64xbf16> to vector<15x64xbf16>
    %c1 = arith.constant 1 : index
    %c64 = arith.constant 64 : index
    %6 = vector.load %arg5[%c1, %c64] : memref<64x320xbf16, #tpu.memory_space<vmem>>, vector<15x64xbf16>
    tpu.vector_store %arg5[%c1, %c64], %5 {strides = array<i32>} : memref<64x320xbf16, #tpu.memory_space<vmem>>, vector<15x64xbf16>,
    %7 = vector.extract_strided_slice %3 {offsets = [1, 0], sizes = [15, 64], strides = [1, 1]} : vector<16x64xbf16> to vector<15x64xbf16>
    %c0_5 = arith.constant 0 : index
    %c192 = arith.constant 192 : index
    %8 = vector.load %arg5[%c0_5, %c192] : memref<64x320xbf16, #tpu.memory_space<vmem>>, vector<15x64xbf16>
    tpu.vector_store %arg5[%c0_5, %c192], %7 {strides = array<i32>} : memref<64x320xbf16, #tpu.memory_space<vmem>>, vector<15x64xbf16>,
    %9 = vector.extract_strided_slice %3 {offsets = [0, 0], sizes = [14, 64], strides = [1, 1]} : vector<16x64xbf16> to vector<14x64xbf16>
    %c2 = arith.constant 2 : index
    %c0_6 = arith.constant 0 : index
    %10 = vector.load %arg5[%c2, %c0_6] : memref<64x320xbf16, #tpu.memory_space<vmem>>, vector<14x64xbf16>
    tpu.vector_store %arg5[%c2, %c0_6], %9 {strides = array<i32>} : memref<64x320xbf16, #tpu.memory_space<vmem>>, vector<14x64xbf16>,
    %11 = vector.extract_strided_slice %3 {offsets = [2, 0], sizes = [14, 64], strides = [1, 1]} : vector<16x64xbf16> to vector<14x64xbf16>
    %c0_7 = arith.constant 0 : index
    %c256 = arith.constant 256 : index
    %12 = vector.load %arg5[%c0_7, %c256] : memref<64x320xbf16, #tpu.memory_space<vmem>>, vector<14x64xbf16>
    tpu.vector_store %arg5[%c0_7, %c256], %11 {strides = array<i32>} : memref<64x320xbf16, #tpu.memory_space<vmem>>, vector<14x64xbf16>,
    %c1_8 = arith.constant 1 : index
    %c0_9 = arith.constant 0 : index
    %c0_10 = arith.constant 0 : index
    %13 = vector.load %arg1[%c1_8, %c0_9, %c0_10] : memref<4x16x64xbf16, #tpu.memory_space<vmem>>, vector<1x16x64xbf16>
    %14 = vector.shape_cast %13 : vector<1x16x64xbf16> to vector<16x64xbf16>
    %c16 = arith.constant 16 : index
    %c128_11 = arith.constant 128 : index
    %15 = vector.load %arg5[%c16, %c128_11] : memref<64x320xbf16, #tpu.memory_space<vmem>>, vector<16x64xbf16>
    tpu.vector_store %arg5[%c16, %c128_11], %14 {strides = array<i32>} : memref<64x320xbf16, #tpu.memory_space<vmem>>, vector<16x64xbf16>,
    %16 = vector.extract_strided_slice %14 {offsets = [0, 0], sizes = [15, 64], strides = [1, 1]} : vector<16x64xbf16> to vector<15x64xbf16>
    %c17 = arith.constant 17 : index
    %c64_12 = arith.constant 64 : index
    %17 = vector.load %arg5[%c17, %c64_12] : memref<64x320xbf16, #tpu.memory_space<vmem>>, vector<15x64xbf16>
    tpu.vector_store %arg5[%c17, %c64_12], %16 {strides = array<i32>} : memref<64x320xbf16, #tpu.memory_space<vmem>>, vector<15x64xbf16>,
    %18 = vector.extract_strided_slice %14 {offsets = [1, 0], sizes = [15, 64], strides = [1, 1]} : vector<16x64xbf16> to vector<15x64xbf16>
    %c16_13 = arith.constant 16 : index
    %c192_14 = arith.constant 192 : index
    %19 = vector.load %arg5[%c16_13, %c192_14] : memref<64x320xbf16, #tpu.memory_space<vmem>>, vector<15x64xbf16>
    tpu.vector_store %arg5[%c16_13, %c192_14], %18 {strides = array<i32>} : memref<64x320xbf16, #tpu.memory_space<vmem>>, vector<15x64xbf16>,
    %20 = vector.extract_strided_slice %14 {offsets = [0, 0], sizes = [14, 64], strides = [1, 1]} : vector<16x64xbf16> to vector<14x64xbf16>
    %c18 = arith.constant 18 : index
    %c0_15 = arith.constant 0 : index
    %21 = vector.load %arg5[%c18, %c0_15] : memref<64x320xbf16, #tpu.memory_space<vmem>>, vector<14x64xbf16>
    tpu.vector_store %arg5[%c18, %c0_15], %20 {strides = array<i32>} : memref<64x320xbf16, #tpu.memory_space<vmem>>, vector<14x64xbf16>,
    %22 = vector.extract_strided_slice %14 {offsets = [2, 0], sizes = [14, 64], strides = [1, 1]} : vector<16x64xbf16> to vector<14x64xbf16>
    %c16_16 = arith.constant 16 : index
    %c256_17 = arith.constant 256 : index
    %23 = vector.load %arg5[%c16_16, %c256_17] : memref<64x320xbf16, #tpu.memory_space<vmem>>, vector<14x64xbf16>
    tpu.vector_store %arg5[%c16_16, %c256_17], %22 {strides = array<i32>} : memref<64x320xbf16, #tpu.memory_space<vmem>>, vector<14x64xbf16>,
    %c2_18 = arith.constant 2 : index
    %c0_19 = arith.constant 0 : index
    %c0_20 = arith.constant 0 : index
    %24 = vector.load %arg1[%c2_18, %c0_19, %c0_20] : memref<4x16x64xbf16, #tpu.memory_space<vmem>>, vector<1x16x64xbf16>
    %25 = vector.shape_cast %24 : vector<1x16x64xbf16> to vector<16x64xbf16>
    %c32 = arith.constant 32 : index
    %c128_21 = arith.constant 128 : index
    %26 = vector.load %arg5[%c32, %c128_21] : memref<64x320xbf16, #tpu.memory_space<vmem>>, vector<16x64xbf16>
    tpu.vector_store %arg5[%c32, %c128_21], %25 {strides = array<i32>} : memref<64x320xbf16, #tpu.memory_space<vmem>>, vector<16x64xbf16>,
    %27 = vector.extract_strided_slice %25 {offsets = [0, 0], sizes = [15, 64], strides = [1, 1]} : vector<16x64xbf16> to vector<15x64xbf16>
    %c33 = arith.constant 33 : index
    %c64_22 = arith.constant 64 : index
    %28 = vector.load %arg5[%c33, %c64_22] : memref<64x320xbf16, #tpu.memory_space<vmem>>, vector<15x64xbf16>
    tpu.vector_store %arg5[%c33, %c64_22], %27 {strides = array<i32>} : memref<64x320xbf16, #tpu.memory_space<vmem>>, vector<15x64xbf16>,
    %29 = vector.extract_strided_slice %25 {offsets = [1, 0], sizes = [15, 64], strides = [1, 1]} : vector<16x64xbf16> to vector<15x64xbf16>
    %c32_23 = arith.constant 32 : index
    %c192_24 = arith.constant 192 : index
    %30 = vector.load %arg5[%c32_23, %c192_24] : memref<64x320xbf16, #tpu.memory_space<vmem>>, vector<15x64xbf16>
    tpu.vector_store %arg5[%c32_23, %c192_24], %29 {strides = array<i32>} : memref<64x320xbf16, #tpu.memory_space<vmem>>, vector<15x64xbf16>,
    %31 = vector.extract_strided_slice %25 {offsets = [0, 0], sizes = [14, 64], strides = [1, 1]} : vector<16x64xbf16> to vector<14x64xbf16>
    %c34 = arith.constant 34 : index
    %c0_25 = arith.constant 0 : index
    %32 = vector.load %arg5[%c34, %c0_25] : memref<64x320xbf16, #tpu.memory_space<vmem>>, vector<14x64xbf16>
    tpu.vector_store %arg5[%c34, %c0_25], %31 {strides = array<i32>} : memref<64x320xbf16, #tpu.memory_space<vmem>>, vector<14x64xbf16>,
    %33 = vector.extract_strided_slice %25 {offsets = [2, 0], sizes = [14, 64], strides = [1, 1]} : vector<16x64xbf16> to vector<14x64xbf16>
    %c32_26 = arith.constant 32 : index
    %c256_27 = arith.constant 256 : index
    %34 = vector.load %arg5[%c32_26, %c256_27] : memref<64x320xbf16, #tpu.memory_space<vmem>>, vector<14x64xbf16>
    tpu.vector_store %arg5[%c32_26, %c256_27], %33 {strides = array<i32>} : memref<64x320xbf16, #tpu.memory_space<vmem>>, vector<14x64xbf16>,
    %c3 = arith.constant 3 : index
    %c0_28 = arith.constant 0 : index
    %c0_29 = arith.constant 0 : index
    %35 = vector.load %arg1[%c3, %c0_28, %c0_29] : memref<4x16x64xbf16, #tpu.memory_space<vmem>>, vector<1x16x64xbf16>
    %36 = vector.shape_cast %35 : vector<1x16x64xbf16> to vector<16x64xbf16>
    %c48 = arith.constant 48 : index
    %c128_30 = arith.constant 128 : index
    %37 = vector.load %arg5[%c48, %c128_30] : memref<64x320xbf16, #tpu.memory_space<vmem>>, vector<16x64xbf16>
    tpu.vector_store %arg5[%c48, %c128_30], %36 {strides = array<i32>} : memref<64x320xbf16, #tpu.memory_space<vmem>>, vector<16x64xbf16>,
    %38 = vector.extract_strided_slice %36 {offsets = [0, 0], sizes = [15, 64], strides = [1, 1]} : vector<16x64xbf16> to vector<15x64xbf16>
    %c49 = arith.constant 49 : index
    %c64_31 = arith.constant 64 : index
    %39 = vector.load %arg5[%c49, %c64_31] : memref<64x320xbf16, #tpu.memory_space<vmem>>, vector<15x64xbf16>
    tpu.vector_store %arg5[%c49, %c64_31], %38 {strides = array<i32>} : memref<64x320xbf16, #tpu.memory_space<vmem>>, vector<15x64xbf16>,
    %40 = vector.extract_strided_slice %36 {offsets = [1, 0], sizes = [15, 64], strides = [1, 1]} : vector<16x64xbf16> to vector<15x64xbf16>
    %c48_32 = arith.constant 48 : index
    %c192_33 = arith.constant 192 : index
    %41 = vector.load %arg5[%c48_32, %c192_33] : memref<64x320xbf16, #tpu.memory_space<vmem>>, vector<15x64xbf16>
    tpu.vector_store %arg5[%c48_32, %c192_33], %40 {strides = array<i32>} : memref<64x320xbf16, #tpu.memory_space<vmem>>, vector<15x64xbf16>,
    %42 = vector.extract_strided_slice %36 {offsets = [0, 0], sizes = [14, 64], strides = [1, 1]} : vector<16x64xbf16> to vector<14x64xbf16>
    %c50 = arith.constant 50 : index
    %c0_34 = arith.constant 0 : index
    %43 = vector.load %arg5[%c50, %c0_34] : memref<64x320xbf16, #tpu.memory_space<vmem>>, vector<14x64xbf16>
    tpu.vector_store %arg5[%c50, %c0_34], %42 {strides = array<i32>} : memref<64x320xbf16, #tpu.memory_space<vmem>>, vector<14x64xbf16>,
    %44 = vector.extract_strided_slice %36 {offsets = [2, 0], sizes = [14, 64], strides = [1, 1]} : vector<16x64xbf16> to vector<14x64xbf16>
    %c48_35 = arith.constant 48 : index
    %c256_36 = arith.constant 256 : index
    %45 = vector.load %arg5[%c48_35, %c256_36] : memref<64x320xbf16, #tpu.memory_space<vmem>>, vector<14x64xbf16>
    tpu.vector_store %arg5[%c48_35, %c256_36], %44 {strides = array<i32>} : memref<64x320xbf16, #tpu.memory_space<vmem>>, vector<14x64xbf16>,
    %c0_37 = arith.constant 0 : index
    %c0_38 = arith.constant 0 : index
    %46 = vector.load %arg5[%c0_37, %c0_38] : memref<64x320xbf16, #tpu.memory_space<vmem>>, vector<64x320xbf16>
    %c0_39 = arith.constant 0 : index
    %c0_40 = arith.constant 0 : index
    %47 = vector.load %arg2[%c0_39, %c0_40] : memref<320x384xbf16, #tpu.memory_space<vmem>>, vector<320x384xbf16>
    %cst_41 = arith.constant dense<0.000000e+00> : vector<64x384xf32>
    %48 = tpu.matmul %46, %47, %cst_41 {dimension_numbers = #tpu.dot_dimension_numbers<[1], [0], [0], [1], [0, 0, 1, 1], [], []>} : vector<64x320xbf16>, vector<320x384xbf16>, vector<64x384xf32> -> vector<64x384xf32>
    %c0_42 = arith.constant 0 : index
    %c0_43 = arith.constant 0 : index
    %49 = vector.load %arg3[%c0_42, %c0_43] : memref<1x384xf32, #tpu.memory_space<vmem>>, vector<1x384xf32>
    %50 = vector.broadcast %49 : vector<1x384xf32> to vector<64x384xf32>
    %51 = arith.addf %48, %50 : vector<64x384xf32>
    %52 = vector.extract_strided_slice %51 {offsets = [0, 0], sizes = [64, 128], strides = [1, 1]} : vector<64x384xf32> to vector<64x128xf32>
    %53 = vector.extract_strided_slice %51 {offsets = [0, 128], sizes = [64, 128], strides = [1, 1]} : vector<64x384xf32> to vector<64x128xf32>
    %54 = arith.maximumf %52, %53 : vector<64x128xf32>
    %55 = vector.extract_strided_slice %51 {offsets = [0, 256], sizes = [64, 128], strides = [1, 1]} : vector<64x384xf32> to vector<64x128xf32>
    %56 = arith.maximumf %54, %55 : vector<64x128xf32>
    %57 = math.tanh %56 : vector<64x128xf32>
    %58 = vector.extract_strided_slice %57 {offsets = [0, 0], sizes = [16, 128], strides = [1, 1]} : vector<64x128xf32> to vector<16x128xf32>
    %c0_44 = arith.constant 0 : index
    %c0_45 = arith.constant 0 : index
    %c0_46 = arith.constant 0 : index
    %59 = vector.load %arg4[%c0_44, %c0_45, %c0_46] : memref<4x16x128xf32, #tpu.memory_space<vmem>>, vector<1x16x128xf32>
    %60 = vector.shape_cast %59 : vector<1x16x128xf32> to vector<16x128xf32>
    %61 = vector.shape_cast %58 : vector<16x128xf32> to vector<1x16x128xf32>
    tpu.vector_store %arg4[%c0_44, %c0_45, %c0_46], %61 {strides = array<i32>} : memref<4x16x128xf32, #tpu.memory_space<vmem>>, vector<1x16x128xf32>,
    %62 = vector.extract_strided_slice %57 {offsets = [16, 0], sizes = [16, 128], strides = [1, 1]} : vector<64x128xf32> to vector<16x128xf32>
    %c1_47 = arith.constant 1 : index
    %c0_48 = arith.constant 0 : index
    %c0_49 = arith.constant 0 : index
    %63 = vector.load %arg4[%c1_47, %c0_48, %c0_49] : memref<4x16x128xf32, #tpu.memory_space<vmem>>, vector<1x16x128xf32>
    %64 = vector.shape_cast %63 : vector<1x16x128xf32> to vector<16x128xf32>
    %65 = vector.shape_cast %62 : vector<16x128xf32> to vector<1x16x128xf32>
    tpu.vector_store %arg4[%c1_47, %c0_48, %c0_49], %65 {strides = array<i32>} : memref<4x16x128xf32, #tpu.memory_space<vmem>>, vector<1x16x128xf32>,
    %66 = vector.extract_strided_slice %57 {offsets = [32, 0], sizes = [16, 128], strides = [1, 1]} : vector<64x128xf32> to vector<16x128xf32>
    %c2_50 = arith.constant 2 : index
    %c0_51 = arith.constant 0 : index
    %c0_52 = arith.constant 0 : index
    %67 = vector.load %arg4[%c2_50, %c0_51, %c0_52] : memref<4x16x128xf32, #tpu.memory_space<vmem>>, vector<1x16x128xf32>
    %68 = vector.shape_cast %67 : vector<1x16x128xf32> to vector<16x128xf32>
    %69 = vector.shape_cast %66 : vector<16x128xf32> to vector<1x16x128xf32>
    tpu.vector_store %arg4[%c2_50, %c0_51, %c0_52], %69 {strides = array<i32>} : memref<4x16x128xf32, #tpu.memory_space<vmem>>, vector<1x16x128xf32>,
    %70 = vector.extract_strided_slice %57 {offsets = [48, 0], sizes = [16, 128], strides = [1, 1]} : vector<64x128xf32> to vector<16x128xf32>
    %c3_53 = arith.constant 3 : index
    %c0_54 = arith.constant 0 : index
    %c0_55 = arith.constant 0 : index
    %71 = vector.load %arg4[%c3_53, %c0_54, %c0_55] : memref<4x16x128xf32, #tpu.memory_space<vmem>>, vector<1x16x128xf32>
    %72 = vector.shape_cast %71 : vector<1x16x128xf32> to vector<16x128xf32>
    %73 = vector.shape_cast %70 : vector<16x128xf32> to vector<1x16x128xf32>
    tpu.vector_store %arg4[%c3_53, %c0_54, %c0_55], %73 {strides = array<i32>} : memref<4x16x128xf32, #tpu.memory_space<vmem>>, vector<1x16x128xf32>,
    return
  }
  func.func @transform_0(%arg0: i32) -> (i32, i32, i32) {
    %c0_i32 = arith.constant 0 : i32
    %c0_i32_0 = arith.constant 0 : i32
    %c0_i32_1 = arith.constant 0 : i32
    return %arg0, %c0_i32, %c0_i32_0 : i32, i32, i32
  }
  func.func @transform_1(%arg0: i32) -> (i32, i32) {
    %c0_i32 = arith.constant 0 : i32
    %c0_i32_0 = arith.constant 0 : i32
    %c0_i32_1 = arith.constant 0 : i32
    return %c0_i32, %c0_i32_0 : i32, i32
  }
  func.func @transform_2(%arg0: i32) -> (i32, i32) {
    %c0_i32 = arith.constant 0 : i32
    %c0_i32_0 = arith.constant 0 : i32
    %c0_i32_1 = arith.constant 0 : i32
    return %c0_i32, %c0_i32_0 : i32, i32
  }
  func.func @transform_3(%arg0: i32) -> (i32, i32, i32) {
    %c0_i32 = arith.constant 0 : i32
    %c0_i32_0 = arith.constant 0 : i32
    %c0_i32_1 = arith.constant 0 : i32
    return %arg0, %c0_i32, %c0_i32_0 : i32, i32, i32
  }
}

</mosaic_0001>

<llo_original>
// kernel: tpu_custom_call.1
$region0: #{tpu_custom_call.1}
  #allocation0 [shape = 'u32[]', space=smem, size = 0x4, offset = 0x4, fixed_abs, tag = 'smem constant byte address 0x4 - core index']
  #allocation1 [shape = 'u32[144,128]{1,0:T(1,128)}', space=vmem, size = 0x12000, scoped, tag = 'internal scratch']
  #allocation2 [shape = 'bf16[64,320]{1,0:T(16,128)(2,1)}', space=vmem, size = 0xc000, scoped, tag = 'scratch operand']
  %s0 = inlined_call_operand.hbm [shape: bf16[8,16,64], index: 0, kind: input, shape index: {}]
  %s1 = inlined_call_operand.hbm [shape: bf16[320,384], index: 1, kind: input, shape index: {}]
  %s2 = inlined_call_operand.vmem [shape: f32[1,384], index: 2, kind: input, shape index: {}]
  %s3 = inlined_call_operand.hbm [shape: f32[8,16,128], index: 3, kind: output, shape index: {}]
  %s4 = sld [smem:[#allocation0]]
  $region53: #{tpu_custom_call.1} parent=0
    _
  %s6 = ssub.s32 1, %s4
  %s7 = scalar_select 0, %s6, %s4
  $region1: #{tpu_custom_call.1} parent=0
    #allocation3 [shape = 'u8[32768]{0}', space=vmem, size = 0x8000, scoped, tag = 'input window, operand 0']
    #allocation4 [shape = 's32[2]{0}', space=sflag, size = 0x8, scoped, tag = 'scoped memory for tpu_custom_call.1']
    #allocation5 [shape = 's32[2]{0}', space=sflag, size = 0x8, scoped, tag = 'scoped memory for tpu_custom_call.1']
    #allocation6 [shape = 'u8[245760]{0}', space=vmem, size = 0x3c000, scoped, tag = 'input window, operand 1, single buffered']
    #allocation7 [shape = 's32[1]{0}', space=sflag, size = 0x4, scoped, tag = 'scoped memory for tpu_custom_call.1']
    #allocation8 [shape = 'u8[65536]{0}', space=vmem, size = 0x10000, scoped, tag = 'output window, operand 0']
    %8 = vsyncpa [#allocation4], 0
    %s9 = scalar_lea.sflag [#allocation4], 1
    %10 = vsyncpa %s9, 0
    %11 = vsyncpa [#allocation7], 0
    %12 = vsyncpa [#allocation5], 0
    %s13 = scalar_lea.sflag [#allocation5], 1
    %14 = vsyncpa %s13, 0
    loop: start=0, step=1, limit=4
    $region2: #{tpu_custom_call.1} parent=1 // loop_pre_header
      _
    $region3: #{tpu_custom_call.1} parent=1 // loop_header
      %s16 = sphi 0, %s20
      %p17 = scmp.ge.s32.totalorder %s16, 4
      %s26 = sphi 0, %s28
      %s29 = sphi 0, %s26
      %s30 = sphi 0, %s29
      %s46 = sphi 0, %s30
      %s50 = sphi 0, %s50
      %s52 = sphi 0, %s50
      %s53 = sphi 0, %s52
      %s67 = sphi 0, %s53
      %s71 = sphi 0, %s71
      %s73 = sphi 0, %s71
      %s74 = sphi 0, %s73
      %s88 = sphi 0, %s74
      %s94 = sphi 0, %s96
      %s97 = sphi 0, %s94
      %s98 = sphi 0, %s97
      %s114 = sphi 0, %s98
    $region4: #{tpu_custom_call.1} parent=1 // loop_header_branch
      %19 = sbr.rel (%p17) target = $region8
    $region5: #{tpu_custom_call.1} parent=1 // loop_body
      %s21 = ssub.s32 %s16, 1
      %s22 = ssub.s32 %s16, 2
      %s23 = sadd.s32 %s16, 1
      %s24 = ssub.s32 %s16, %s23
      %p25 = scmp.eq.s32.totalorder %s24, 0
      %s27 = sadd.s32 %s26, 1
      %s28 = scalar_select %p25, %s26, %s27
      %p31 = pneg %p25
      %p32 = scmp.eq.s32.totalorder %s16, 1
      %p33 = por %p31, %p32
      %p34 = scmp.ne.s32.totalorder %s26, %s29
      %p35 = scmp.eq.s32.totalorder %s16, 0
      %p36 = por %p34, %p35
      %p37 = scmp.ne.s32.totalorder %s26, %s29
      %p38 = scmp.eq.s32.totalorder %s21, 1
      %p39 = por %p37, %p38
      %p40 = scmp.ne.s32.totalorder %s29, %s30
      %p41 = scmp.eq.s32.totalorder %s21, 0
      %p42 = por %p40, %p41
      %p43 = scmp.ne.s32.totalorder %s29, %s30
      %p44 = scmp.eq.s32.totalorder %s22, 1
      %p45 = por %p43, %p44
      %p47 = scmp.ne.s32.totalorder %s30, %s46
      %p48 = scmp.eq.s32.totalorder %s22, 0
      %p49 = por %p47, %p48
      %s51 = sadd.s32 %s50, 1
      %p54 = scmp.eq.s32.totalorder %s16, 1
      %p55 = scmp.ne.s32.totalorder %s50, %s52
      %p56 = scmp.eq.s32.totalorder %s16, 0
      %p57 = por %p55, %p56
      %p58 = scmp.ne.s32.totalorder %s50, %s52
      %p59 = scmp.eq.s32.totalorder %s21, 1
      %p60 = por %p58, %p59
      %p61 = scmp.ne.s32.totalorder %s52, %s53
      %p62 = scmp.eq.s32.totalorder %s21, 0
      %p63 = por %p61, %p62
      %p64 = scmp.ne.s32.totalorder %s52, %s53
      %p65 = scmp.eq.s32.totalorder %s22, 1
      %p66 = por %p64, %p65
      %p68 = scmp.ne.s32.totalorder %s53, %s67
      %p69 = scmp.eq.s32.totalorder %s22, 0
      %p70 = por %p68, %p69
      %s72 = sadd.s32 %s71, 1
      %p75 = scmp.eq.s32.totalorder %s16, 1
      %p76 = scmp.ne.s32.totalorder %s71, %s73
      %p77 = scmp.eq.s32.totalorder %s16, 0
      %p78 = por %p76, %p77
      %p79 = scmp.ne.s32.totalorder %s71, %s73
      %p80 = scmp.eq.s32.totalorder %s21, 1
      %p81 = por %p79, %p80
      %p82 = scmp.ne.s32.totalorder %s73, %s74
      %p83 = scmp.eq.s32.totalorder %s21, 0
      %p84 = por %p82, %p83
      %p85 = scmp.ne.s32.totalorder %s73, %s74
      %p86 = scmp.eq.s32.totalorder %s22, 1
      %p87 = por %p85, %p86
      %p89 = scmp.ne.s32.totalorder %s74, %s88
      %p90 = scmp.eq.s32.totalorder %s22, 0
      %p91 = por %p89, %p90
      %s92 = ssub.s32 %s16, %s23
      %p93 = scmp.eq.s32.totalorder %s92, 0
      %s95 = sadd.s32 %s94, 1
      %s96 = scalar_select %p93, %s94, %s95
      %p99 = pneg %p93
      %p100 = scmp.eq.s32.totalorder %s16, 1
      %p101 = por %p99, %p100
      %p102 = scmp.ne.s32.totalorder %s94, %s97
      %p103 = scmp.eq.s32.totalorder %s16, 0
      %p104 = por %p102, %p103
      %p105 = scmp.ne.s32.totalorder %s94, %s97
      %p106 = scmp.eq.s32.totalorder %s21, 1
      %p107 = por %p105, %p106
      %p108 = scmp.ne.s32.totalorder %s97, %s98
      %p109 = scmp.eq.s32.totalorder %s21, 0
      %p110 = por %p108, %p109
      %p111 = scmp.ne.s32.totalorder %s97, %s98
      %p112 = scmp.eq.s32.totalorder %s22, 1
      %p113 = por %p111, %p112
      %p115 = scmp.ne.s32.totalorder %s98, %s114
      %p116 = scmp.eq.s32.totalorder %s22, 0
      %p117 = por %p115, %p116
      %p118 = scmp.le.s32.totalorder 1, %s16
      %p119 = scmp.lt.s32.totalorder %s16, 3
      %p120 = pnand %p118, %p119
      %p121 = pneg %p120
      // Predicated region
      $region9: #{tpu_custom_call.1} parent=5 // pred_check
        _
      $region10: #{tpu_custom_call.1} parent=5 // pred_check_branch
        %123 = sbr.rel (%p120) target = $region12
      $region11: #{tpu_custom_call.1} parent=5 // pred_region
        %s124 = ssub.s32 %s16, 1
        // Predicated region
        $region13: #{tpu_custom_call.1} parent=11 // pred_check
          %p125 = pneg %p63
        $region14: #{tpu_custom_call.1} parent=11 // pred_check_branch
          %127 = sbr.rel (%p125) target = $region16
        $region15: #{tpu_custom_call.1} parent=11 // pred_region
          %s129 = ssub.s32 7680, 7680
          %130 = vsyncadd [#allocation7], %s129
          %s131 = sshll.u32 [#allocation6], 4
          %s132 = int_to_ptr.vmem [resolvable:$true] %s131
          %137 = dma.hbm_to_vmem [thread:$0]  %s1, 7680, %s132, [#allocation7], 192, 192, 12
        $region16: #{tpu_custom_call.1} parent=11 // pred_fallthru
          _
        // Predicated region
        $region17: #{tpu_custom_call.1} parent=11 // pred_check
          %p138 = pneg %p84
        $region18: #{tpu_custom_call.1} parent=11 // pred_check_branch
          %140 = sbr.rel (%p138) target = $region20
        $region19: #{tpu_custom_call.1} parent=11 // pred_region
          _
        $region20: #{tpu_custom_call.1} parent=11 // pred_fallthru
          _
      $region12: #{tpu_custom_call.1} parent=5 // pred_fallthru
        _
      %p141 = scmp.lt.s32.totalorder %s16, 2
      // Predicated region
      $region21: #{tpu_custom_call.1} parent=5 // pred_check
        %p142 = pneg %p141
      $region22: #{tpu_custom_call.1} parent=5 // pred_check_branch
        %144 = sbr.rel (%p142) target = $region24
      $region23: #{tpu_custom_call.1} parent=5 // pred_region
        // Predicated region
        $region25: #{tpu_custom_call.1} parent=23 // pred_check
          %p145 = pneg %p36
        $region26: #{tpu_custom_call.1} parent=23 // pred_check_branch
          %147 = sbr.rel (%p145) target = $region28
        $region27: #{tpu_custom_call.1} parent=23 // pred_region
          %s148 = sand.u32 %s26, 1
          %s149 = scalar_lea.sflag [#allocation4], %s148
          %s150 = sand.u32 %s26, 1
          %s151 = smul.addr %s150, 32
          %s152 = scalar_lea.vmem [#allocation3], %s151
          %s153 = smul.u32 4, %s16
          %s155 = ssub.s32 512, 512
          %156 = vsyncadd %s149, %s155
          %s157 = smul.addr %s153, 2
          %s158 = smul.addr %s157, 64
          %s159 = scalar_lea.hbm %s0, %s158
          %s160 = sshll.u32 %s152, 4
          %s161 = int_to_ptr.vmem [resolvable:$true] %s160
          %166 = dma.hbm_to_vmem [thread:$0]  %s159, 512, %s161, %s149, 64, 64, 4
        $region28: #{tpu_custom_call.1} parent=23 // pred_fallthru
          _
      $region24: #{tpu_custom_call.1} parent=5 // pred_fallthru
        _
      %p167 = scmp.le.s32.totalorder 1, %s16
      %p168 = scmp.lt.s32.totalorder %s16, 3
      %p169 = pnand %p167, %p168
      %p170 = pneg %p169
      // Predicated region
      $region29: #{tpu_custom_call.1} parent=5 // pred_check
        _
      $region30: #{tpu_custom_call.1} parent=5 // pred_check_branch
        %172 = sbr.rel (%p169) target = $region32
      $region31: #{tpu_custom_call.1} parent=5 // pred_region
        %s173 = ssub.s32 %s16, 1
        %s174 = sand.u32 %s29, 1
        %s175 = scalar_lea.sflag [#allocation4], %s174
        %s176 = sand.u32 %s29, 1
        %s177 = smul.addr %s176, 32
        %s178 = scalar_lea.vmem [#allocation3], %s177
        // Predicated region
        $region33: #{tpu_custom_call.1} parent=31 // pred_check
          %p179 = pneg %p42
        $region34: #{tpu_custom_call.1} parent=31 // pred_check_branch
          %181 = sbr.rel (%p179) target = $region36
        $region35: #{tpu_custom_call.1} parent=31 // pred_region
          %182 = dma.done %s175, 512
        $region36: #{tpu_custom_call.1} parent=31 // pred_fallthru
          _
        // Predicated region
        $region37: #{tpu_custom_call.1} parent=31 // pred_check
          %p183 = pneg %p63
        $region38: #{tpu_custom_call.1} parent=31 // pred_check_branch
          %185 = sbr.rel (%p183) target = $region40
        $region39: #{tpu_custom_call.1} parent=31 // pred_region
          %186 = dma.done [#allocation7], 7680
        $region40: #{tpu_custom_call.1} parent=31 // pred_fallthru
          _
        %s187 = sand.u32 %s29, 1
        %s188 = scalar_lea.sflag [#allocation4], %s187
        %s189 = sand.u32 %s29, 1
        %s190 = smul.addr %s189, 32
        %s191 = scalar_lea.vmem [#allocation3], %s190
        %p192 = pneg %p42
        %p193 = pneg %p39
        %p194 = pneg %p63
        %p195 = pneg %p60
        %p196 = pneg %p84
        %p197 = pneg %p81
        %p198 = pneg %p110
        %p199 = pneg %p107
        %s200 = sand.u32 %s97, 1
        %s201 = scalar_lea.sflag [#allocation5], %s200
        %s202 = sand.u32 %s97, 1
        %s203 = smul.addr %s202, 64
        %s204 = scalar_lea.vmem [#allocation8], %s203
        %s205 = smul.u32 4, %s21
        %s206 = smul.u32 4, %s21
        %208 = vst [vmem:[#allocation2] sm:$0xff] 0
        %209 = vst [vmem:[#allocation2 + $0x8] sm:$0xff] 0
        %vm210 = vcmask 523264
        %211 = vst.msk [vmem:[#allocation2 + $0x10] sm:$0xff] %vm210, 0
        %212 = vst [vmem:[#allocation2 + $0x18] sm:$0xff] 0
        %213 = vst [vmem:[#allocation2 + $0x20] sm:$0xff] 0
        %214 = vst.msk [vmem:[#allocation2 + $0x28] sm:$0xff] %vm210, 0
        %215 = vst [vmem:[#allocation2 + $0x30] sm:$0xff] 0
        %216 = vst [vmem:[#allocation2 + $0x38] sm:$0xff] 0
        %217 = vst.msk [vmem:[#allocation2 + $0x40] sm:$0xff] %vm210, 0
        %218 = vst [vmem:[#allocation2 + $0x48] sm:$0xff] 0
        %219 = vst [vmem:[#allocation2 + $0x50] sm:$0xff] 0
        %220 = vst.msk [vmem:[#allocation2 + $0x58] sm:$0xff] %vm210, 0
        %v221 = vld [vmem:[%s178] sm:$0xf]
        %v222 = vld [vmem:[%s178 + $0x4] sm:$0xf]
        %v225 = vunpack.c.l.b16 %v221
        %v226 = vunpack.c.l.b16 %v222
        %v227 = vpack.c.b16 %v226, %v225
        %229 = vst.msk [vmem:[#allocation2 + $0x8] sm:$0xff] %vm210, %v227
        %v231 = vshrl.u32 %v227, 16
        %v233 = vrot.slane %v231, 7
        %v234 = vshll.u32 %v227, 16
        %v236 = vor.u32 %v233, %v234
        %237 = vrot.lane.b32.xlu0 %v236, 64
        %v238 = vpop.permute.xlu0 %237
        %vm240 = vcmask 1048064
        %vm241 = vsmask.f32 7938
        %vm242 = vmand %vm240, %vm241
        %v243 = vld [vmem:[#allocation2] sm:$0xff]
        %v244 = vsel %vm242, %v238, %v243
        %245 = vst [vmem:[#allocation2] sm:$0xff] %v244
        %v246 = vrot.slane %v234, 1
        %v247 = vor.u32 %v231, %v246
        %248 = vrot.lane.b32.xlu0 %v247, 64
        %v249 = vpop.permute.xlu0 %248
        %vm251 = vsmask.f32 7424
        %vm252 = vmand %vm240, %vm251
        %v253 = vld [vmem:[#allocation2 + $0x8] sm:$0xff]
        %v254 = vsel %vm252, %v249, %v253
        %255 = vst [vmem:[#allocation2 + $0x8] sm:$0xff] %v254
        %v256 = vrot.slane %v227, 7
        %vm258 = vcmask 523265
        %259 = vst.msk [vmem:[#allocation2] sm:$0xfe] %vm258, %v256
        %v260 = vrot.slane %v227, 1
        %vm262 = vcmask 522240
        %263 = vst.msk [vmem:[#allocation2 + $0x10] sm:$0x7f] %vm262, %v260
        %s264 = scalar_lea.vmem %s178, 8 [#allocation3]
        %v265 = vld [vmem:[%s264] sm:$0xf]
        %v266 = vld [vmem:[%s264 + $0x4] sm:$0xf]
        %v269 = vunpack.c.l.b16 %v265
        %v270 = vunpack.c.l.b16 %v266
        %v271 = vpack.c.b16 %v270, %v269
        %273 = vst.msk [vmem:[#allocation2 + $0x20] sm:$0xff] %vm210, %v271
        %v275 = vshrl.u32 %v271, 16
        %v277 = vrot.slane %v275, 7
        %v278 = vshll.u32 %v271, 16
        %v280 = vor.u32 %v277, %v278
        %281 = vrot.lane.b32.xlu0 %v280, 64
        %v282 = vpop.permute.xlu0 %281
        %v284 = vld [vmem:[#allocation2 + $0x18] sm:$0xff]
        %v285 = vsel %vm242, %v282, %v284
        %286 = vst [vmem:[#allocation2 + $0x18] sm:$0xff] %v285
        %v287 = vrot.slane %v278, 1
        %v288 = vor.u32 %v275, %v287
        %289 = vrot.lane.b32.xlu0 %v288, 64
        %v290 = vpop.permute.xlu0 %289
        %v292 = vld [vmem:[#allocation2 + $0x20] sm:$0xff]
        %v293 = vsel %vm252, %v290, %v292
        %294 = vst [vmem:[#allocation2 + $0x20] sm:$0xff] %v293
        %v295 = vrot.slane %v271, 7
        %297 = vst.msk [vmem:[#allocation2 + $0x18] sm:$0xfe] %vm258, %v295
        %v298 = vrot.slane %v271, 1
        %300 = vst.msk [vmem:[#allocation2 + $0x28] sm:$0x7f] %vm262, %v298
        %s301 = scalar_lea.vmem %s178, 16 [#allocation3]
        %v302 = vld [vmem:[%s301] sm:$0xf]
        %v303 = vld [vmem:[%s301 + $0x4] sm:$0xf]
        %v306 = vunpack.c.l.b16 %v302
        %v307 = vunpack.c.l.b16 %v303
        %v308 = vpack.c.b16 %v307, %v306
        %310 = vst.msk [vmem:[#allocation2 + $0x38] sm:$0xff] %vm210, %v308
        %v312 = vshrl.u32 %v308, 16
        %v314 = vrot.slane %v312, 7
        %v315 = vshll.u32 %v308, 16
        %v317 = vor.u32 %v314, %v315
        %318 = vrot.lane.b32.xlu0 %v317, 64
        %v319 = vpop.permute.xlu0 %318
        %v321 = vld [vmem:[#allocation2 + $0x30] sm:$0xff]
        %v322 = vsel %vm242, %v319, %v321
        %323 = vst [vmem:[#allocation2 + $0x30] sm:$0xff] %v322
        %v324 = vrot.slane %v315, 1
        %v325 = vor.u32 %v312, %v324
        %326 = vrot.lane.b32.xlu0 %v325, 64
        %v327 = vpop.permute.xlu0 %326
        %v329 = vld [vmem:[#allocation2 + $0x38] sm:$0xff]
        %v330 = vsel %vm252, %v327, %v329
        %331 = vst [vmem:[#allocation2 + $0x38] sm:$0xff] %v330
        %v332 = vrot.slane %v308, 7
        %334 = vst.msk [vmem:[#allocation2 + $0x30] sm:$0xfe] %vm258, %v332
        %v335 = vrot.slane %v308, 1
        %337 = vst.msk [vmem:[#allocation2 + $0x40] sm:$0x7f] %vm262, %v335
        %s338 = scalar_lea.vmem %s178, 24 [#allocation3]
        %v339 = vld [vmem:[%s338] sm:$0xf]
        %v340 = vld [vmem:[%s338 + $0x4] sm:$0xf]
        %v343 = vunpack.c.l.b16 %v339
        %v344 = vunpack.c.l.b16 %v340
        %v345 = vpack.c.b16 %v344, %v343
        %347 = vst.msk [vmem:[#allocation2 + $0x50] sm:$0xff] %vm210, %v345
        %v349 = vshrl.u32 %v345, 16
        %v351 = vrot.slane %v349, 7
        %v352 = vshll.u32 %v345, 16
        %v354 = vor.u32 %v351, %v352
        %355 = vrot.lane.b32.xlu0 %v354, 64
        %v356 = vpop.permute.xlu0 %355
        %v358 = vld [vmem:[#allocation2 + $0x48] sm:$0xff]
        %v359 = vsel %vm242, %v356, %v358
        %360 = vst [vmem:[#allocation2 + $0x48] sm:$0xff] %v359
        %v361 = vrot.slane %v352, 1
        %v362 = vor.u32 %v349, %v361
        %363 = vrot.lane.b32.xlu0 %v362, 64
        %v364 = vpop.permute.xlu0 %363
        %v366 = vld [vmem:[#allocation2 + $0x50] sm:$0xff]
        %v367 = vsel %vm252, %v364, %v366
        %368 = vst [vmem:[#allocation2 + $0x50] sm:$0xff] %v367
        %v369 = vrot.slane %v345, 7
        %371 = vst.msk [vmem:[#allocation2 + $0x48] sm:$0xfe] %vm258, %v369
        %v372 = vrot.slane %v345, 1
        %374 = vst.msk [vmem:[#allocation2 + $0x58] sm:$0x7f] %vm262, %v372
        %v375 = vld [vmem:[#allocation2] sm:$0xff]
        %v376 = vld [vmem:[#allocation2 + $0x8] sm:$0xff]
        %v377 = vld [vmem:[#allocation2 + $0x10] sm:$0xff]
        %v378 = vld [vmem:[#allocation2 + $0x18] sm:$0xff]
        %v379 = vld [vmem:[#allocation2 + $0x20] sm:$0xff]
        %v380 = vld [vmem:[#allocation2 + $0x28] sm:$0xff]
        %v381 = vld [vmem:[#allocation2 + $0x30] sm:$0xff]
        %v382 = vld [vmem:[#allocation2 + $0x38] sm:$0xff]
        %v383 = vld [vmem:[#allocation2 + $0x40] sm:$0xff]
        %v384 = vld [vmem:[#allocation2 + $0x48] sm:$0xff]
        %v385 = vld [vmem:[#allocation2 + $0x50] sm:$0xff]
        %v386 = vld [vmem:[#allocation2 + $0x58] sm:$0xff]
        %v387 = vld [vmem:[#allocation6] sm:$0xff]
        %v388 = vld [vmem:[#allocation6 + $0x8] sm:$0xf]
        %v389 = vld [vmem:[#allocation6 + $0xc] sm:$0xff]
        %v390 = vld [vmem:[#allocation6 + $0x14] sm:$0xf]
        %v391 = vld [vmem:[#allocation6 + $0x18] sm:$0xff]
        %v392 = vld [vmem:[#allocation6 + $0x20] sm:$0xf]
        %v393 = vld [vmem:[#allocation6 + $0x24] sm:$0xff]
        %v394 = vld [vmem:[#allocation6 + $0x2c] sm:$0xf]
        %v395 = vld [vmem:[#allocation6 + $0x30] sm:$0xff]
        %v396 = vld [vmem:[#allocation6 + $0x38] sm:$0xf]
        %v397 = vld [vmem:[#allocation6 + $0x3c] sm:$0xff]
        %v398 = vld [vmem:[#allocation6 + $0x44] sm:$0xf]
        %v399 = vld [vmem:[#allocation6 + $0x48] sm:$0xff]
        %v400 = vld [vmem:[#allocation6 + $0x50] sm:$0xf]
        %v401 = vld [vmem:[#allocation6 + $0x54] sm:$0xff]
        %v402 = vld [vmem:[#allocation6 + $0x5c] sm:$0xf]
        %v403 = vld [vmem:[#allocation6 + $0x60] sm:$0xff]
        %v404 = vld [vmem:[#allocation6 + $0x68] sm:$0xf]
        %v405 = vld [vmem:[#allocation6 + $0x6c] sm:$0xff]
        %v406 = vld [vmem:[#allocation6 + $0x74] sm:$0xf]
        %v407 = vld [vmem:[#allocation6 + $0x78] sm:$0xff]
        %v408 = vld [vmem:[#allocation6 + $0x80] sm:$0xf]
        %v409 = vld [vmem:[#allocation6 + $0x84] sm:$0xff]
        %v410 = vld [vmem:[#allocation6 + $0x8c] sm:$0xf]
        %v411 = vld [vmem:[#allocation6 + $0x90] sm:$0xff]
        %v412 = vld [vmem:[#allocation6 + $0x98] sm:$0xf]
        %v413 = vld [vmem:[#allocation6 + $0x9c] sm:$0xff]
        %v414 = vld [vmem:[#allocation6 + $0xa4] sm:$0xf]
        %v415 = vld [vmem:[#allocation6 + $0xa8] sm:$0xff]
        %v416 = vld [vmem:[#allocation6 + $0xb0] sm:$0xf]
        %v417 = vld [vmem:[#allocation6 + $0xb4] sm:$0xff]
        %v418 = vld [vmem:[#allocation6 + $0xbc] sm:$0xf]
        %v419 = vld [vmem:[#allocation6 + $0xc0] sm:$0xff]
        %v420 = vld [vmem:[#allocation6 + $0xc8] sm:$0xf]
        %v421 = vld [vmem:[#allocation6 + $0xcc] sm:$0xff]
        %v422 = vld [vmem:[#allocation6 + $0xd4] sm:$0xf]
        %v423 = vld [vmem:[#allocation6 + $0xd8] sm:$0xff]
        %v424 = vld [vmem:[#allocation6 + $0xe0] sm:$0xf]
        %v425 = vld [vmem:[#allocation6 + $0xe4] sm:$0xff]
        %v426 = vld [vmem:[#allocation6 + $0xec] sm:$0xf]
        %v427 = vld [vmem:[#allocation6 + $0xf0] sm:$0xff]
        %v428 = vld [vmem:[#allocation6 + $0xf8] sm:$0xf]
        %v429 = vld [vmem:[#allocation6 + $0xfc] sm:$0xff]
        %v430 = vld [vmem:[#allocation6 + $0x104] sm:$0xf]
        %v431 = vld [vmem:[#allocation6 + $0x108] sm:$0xff]
        %v432 = vld [vmem:[#allocation6 + $0x110] sm:$0xf]
        %v433 = vld [vmem:[#allocation6 + $0x114] sm:$0xff]
        %v434 = vld [vmem:[#allocation6 + $0x11c] sm:$0xf]
        %v435 = vld [vmem:[#allocation6 + $0x120] sm:$0xff]
        %v436 = vld [vmem:[#allocation6 + $0x128] sm:$0xf]
        %v437 = vld [vmem:[#allocation6 + $0x12c] sm:$0xff]
        %v438 = vld [vmem:[#allocation6 + $0x134] sm:$0xf]
        %v439 = vld [vmem:[#allocation6 + $0x138] sm:$0xff]
        %v440 = vld [vmem:[#allocation6 + $0x140] sm:$0xf]
        %v441 = vld [vmem:[#allocation6 + $0x144] sm:$0xff]
        %v442 = vld [vmem:[#allocation6 + $0x14c] sm:$0xf]
        %v443 = vld [vmem:[#allocation6 + $0x150] sm:$0xff]
        %v444 = vld [vmem:[#allocation6 + $0x158] sm:$0xf]
        %v445 = vld [vmem:[#allocation6 + $0x15c] sm:$0xff]
        %v446 = vld [vmem:[#allocation6 + $0x164] sm:$0xf]
        %v447 = vld [vmem:[#allocation6 + $0x168] sm:$0xff]
        %v448 = vld [vmem:[#allocation6 + $0x170] sm:$0xf]
        %v449 = vld [vmem:[#allocation6 + $0x174] sm:$0xff]
        %v450 = vld [vmem:[#allocation6 + $0x17c] sm:$0xf]
        %v451 = vld [vmem:[#allocation6 + $0x180] sm:$0xff]
        %v452 = vld [vmem:[#allocation6 + $0x188] sm:$0xf]
        %v453 = vld [vmem:[#allocation6 + $0x18c] sm:$0xff]
        %v454 = vld [vmem:[#allocation6 + $0x194] sm:$0xf]
        %v455 = vld [vmem:[#allocation6 + $0x198] sm:$0xff]
        %v456 = vld [vmem:[#allocation6 + $0x1a0] sm:$0xf]
        %v457 = vld [vmem:[#allocation6 + $0x1a4] sm:$0xff]
        %v458 = vld [vmem:[#allocation6 + $0x1ac] sm:$0xf]
        %v459 = vld [vmem:[#allocation6 + $0x1b0] sm:$0xff]
        %v460 = vld [vmem:[#allocation6 + $0x1b8] sm:$0xf]
        %v461 = vld [vmem:[#allocation6 + $0x1bc] sm:$0xff]
        %v462 = vld [vmem:[#allocation6 + $0x1c4] sm:$0xf]
        %v463 = vld [vmem:[#allocation6 + $0x1c8] sm:$0xff]
        %v464 = vld [vmem:[#allocation6 + $0x1d0] sm:$0xf]
        %v465 = vld [vmem:[#allocation6 + $0x1d4] sm:$0xff]
        %v466 = vld [vmem:[#allocation6 + $0x1dc] sm:$0xf]
        %v467 = vld [vmem:[%s2] sm:$0x7]
        %v469 = vlaneseq
        %v470 = vshrl.u32 %v469, 7
        %v471 = vsub.s32 0, %v470
        %v472 = vrot.slane %v467, %v471
        %v473 = vlaneseq
        %v474 = vshrl.u32 %v473, 7
        %v475 = vsub.s32 1, %v474
        %v476 = vrot.slane %v467, %v475
        %v477 = vlaneseq
        %v478 = vshrl.u32 %v477, 7
        %v479 = vsub.s32 2, %v478
        %v480 = vrot.slane %v467, %v479
        %v564 = vunpack.c.l.b16 %v387
        %v565 = vunpack.c.h.b16 %v387
        %v566 = vunpack.c.l.b16 %v388
        %v567 = vunpack.c.l.b16 %v389
        %v568 = vunpack.c.h.b16 %v389
        %v569 = vunpack.c.l.b16 %v390
        %v570 = vunpack.c.l.b16 %v391
        %v571 = vunpack.c.h.b16 %v391
        %v572 = vunpack.c.l.b16 %v392
        %v573 = vunpack.c.l.b16 %v393
        %v574 = vunpack.c.h.b16 %v393
        %v575 = vunpack.c.l.b16 %v394
        %v576 = vunpack.c.l.b16 %v395
        %v577 = vunpack.c.h.b16 %v395
        %v578 = vunpack.c.l.b16 %v396
        %v579 = vunpack.c.l.b16 %v397
        %v580 = vunpack.c.h.b16 %v397
        %v581 = vunpack.c.l.b16 %v398
        %v582 = vunpack.c.l.b16 %v399
        %v583 = vunpack.c.h.b16 %v399
        %v584 = vunpack.c.l.b16 %v400
        %v585 = vunpack.c.l.b16 %v401
        %v586 = vunpack.c.h.b16 %v401
        %v587 = vunpack.c.l.b16 %v402
        %v588 = vunpack.c.l.b16 %v403
        %v589 = vunpack.c.h.b16 %v403
        %v590 = vunpack.c.l.b16 %v404
        %v591 = vunpack.c.l.b16 %v405
        %v592 = vunpack.c.h.b16 %v405
        %v593 = vunpack.c.l.b16 %v406
        %v594 = vunpack.c.l.b16 %v407
        %v595 = vunpack.c.h.b16 %v407
        %v596 = vunpack.c.l.b16 %v408
        %v597 = vunpack.c.l.b16 %v409
        %v598 = vunpack.c.h.b16 %v409
        %v599 = vunpack.c.l.b16 %v410
        %v600 = vunpack.c.l.b16 %v411
        %v601 = vunpack.c.h.b16 %v411
        %v602 = vunpack.c.l.b16 %v412
        %v603 = vunpack.c.l.b16 %v413
        %v604 = vunpack.c.h.b16 %v413
        %v605 = vunpack.c.l.b16 %v414
        %v606 = vunpack.c.l.b16 %v415
        %v607 = vunpack.c.h.b16 %v415
        %v608 = vunpack.c.l.b16 %v416
        %v609 = vunpack.c.l.b16 %v417
        %v610 = vunpack.c.h.b16 %v417
        %v611 = vunpack.c.l.b16 %v418
        %v612 = vunpack.c.l.b16 %v419
        %v613 = vunpack.c.h.b16 %v419
        %v614 = vunpack.c.l.b16 %v420
        %v615 = vunpack.c.l.b16 %v421
        %v616 = vunpack.c.h.b16 %v421
        %v617 = vunpack.c.l.b16 %v422
        %v618 = vunpack.c.l.b16 %v423
        %v619 = vunpack.c.h.b16 %v423
        %v620 = vunpack.c.l.b16 %v424
        %v621 = vunpack.c.l.b16 %v425
        %v622 = vunpack.c.h.b16 %v425
        %v623 = vunpack.c.l.b16 %v426
        %v624 = vunpack.c.l.b16 %v427
        %v625 = vunpack.c.h.b16 %v427
        %v626 = vunpack.c.l.b16 %v428
        %v627 = vunpack.c.l.b16 %v429
        %v628 = vunpack.c.h.b16 %v429
        %v629 = vunpack.c.l.b16 %v430
        %v630 = vunpack.c.l.b16 %v431
        %v631 = vunpack.c.h.b16 %v431
        %v632 = vunpack.c.l.b16 %v432
        %v633 = vunpack.c.l.b16 %v433
        %v634 = vunpack.c.h.b16 %v433
        %v635 = vunpack.c.l.b16 %v434
        %v636 = vunpack.c.l.b16 %v435
        %v637 = vunpack.c.h.b16 %v435
        %v638 = vunpack.c.l.b16 %v436
        %v639 = vunpack.c.l.b16 %v437
        %v640 = vunpack.c.h.b16 %v437
        %v641 = vunpack.c.l.b16 %v438
        %v642 = vunpack.c.l.b16 %v439
        %v643 = vunpack.c.h.b16 %v439
        %v644 = vunpack.c.l.b16 %v440
        %v645 = vunpack.c.l.b16 %v441
        %v646 = vunpack.c.h.b16 %v441
        %v647 = vunpack.c.l.b16 %v442
        %v648 = vunpack.c.l.b16 %v443
        %v649 = vunpack.c.h.b16 %v443
        %v650 = vunpack.c.l.b16 %v444
        %v651 = vunpack.c.l.b16 %v445
        %v652 = vunpack.c.h.b16 %v445
        %v653 = vunpack.c.l.b16 %v446
        %v654 = vunpack.c.l.b16 %v447
        %v655 = vunpack.c.h.b16 %v447
        %v656 = vunpack.c.l.b16 %v448
        %v657 = vunpack.c.l.b16 %v449
        %v658 = vunpack.c.h.b16 %v449
        %v659 = vunpack.c.l.b16 %v450
        %v660 = vunpack.c.l.b16 %v451
        %v661 = vunpack.c.h.b16 %v451
        %v662 = vunpack.c.l.b16 %v452
        %v663 = vunpack.c.l.b16 %v453
        %v664 = vunpack.c.h.b16 %v453
        %v665 = vunpack.c.l.b16 %v454
        %v666 = vunpack.c.l.b16 %v455
        %v667 = vunpack.c.h.b16 %v455
        %v668 = vunpack.c.l.b16 %v456
        %v669 = vunpack.c.l.b16 %v457
        %v670 = vunpack.c.h.b16 %v457
        %v671 = vunpack.c.l.b16 %v458
        %v672 = vunpack.c.l.b16 %v459
        %v673 = vunpack.c.h.b16 %v459
        %v674 = vunpack.c.l.b16 %v460
        %v675 = vunpack.c.l.b16 %v461
        %v676 = vunpack.c.h.b16 %v461
        %v677 = vunpack.c.l.b16 %v462
        %v678 = vunpack.c.l.b16 %v463
        %v679 = vunpack.c.h.b16 %v463
        %v680 = vunpack.c.l.b16 %v464
        %v681 = vunpack.c.l.b16 %v465
        %v682 = vunpack.c.h.b16 %v465
        %v683 = vunpack.c.l.b16 %v466
        %v684 = vpack.c.b16 %v567, %v564
        %v685 = vpack.c.b16 %v568, %v565
        %v686 = vpack.c.b16 %v569, %v566
        %v687 = vpack.c.b16 %v573, %v570
        %v688 = vpack.c.b16 %v574, %v571
        %v689 = vpack.c.b16 %v575, %v572
        %v690 = vpack.c.b16 %v579, %v576
        %v691 = vpack.c.b16 %v580, %v577
        %v692 = vpack.c.b16 %v581, %v578
        %v693 = vpack.c.b16 %v585, %v582
        %v694 = vpack.c.b16 %v586, %v583
        %v695 = vpack.c.b16 %v587, %v584
        %v696 = vpack.c.b16 %v591, %v588
        %v697 = vpack.c.b16 %v592, %v589
        %v698 = vpack.c.b16 %v593, %v590
        %v699 = vpack.c.b16 %v597, %v594
        %v700 = vpack.c.b16 %v598, %v595
        %v701 = vpack.c.b16 %v599, %v596
        %v702 = vpack.c.b16 %v603, %v600
        %v703 = vpack.c.b16 %v604, %v601
        %v704 = vpack.c.b16 %v605, %v602
        %v705 = vpack.c.b16 %v609, %v606
        %v706 = vpack.c.b16 %v610, %v607
        %v707 = vpack.c.b16 %v611, %v608
        %v708 = vpack.c.b16 %v615, %v612
        %v709 = vpack.c.b16 %v616, %v613
        %v710 = vpack.c.b16 %v617, %v614
        %v711 = vpack.c.b16 %v621, %v618
        %v712 = vpack.c.b16 %v622, %v619
        %v713 = vpack.c.b16 %v623, %v620
        %v714 = vpack.c.b16 %v627, %v624
        %v715 = vpack.c.b16 %v628, %v625
        %v716 = vpack.c.b16 %v629, %v626
        %v717 = vpack.c.b16 %v633, %v630
        %v718 = vpack.c.b16 %v634, %v631
        %v719 = vpack.c.b16 %v635, %v632
        %v720 = vpack.c.b16 %v639, %v636
        %v721 = vpack.c.b16 %v640, %v637
        %v722 = vpack.c.b16 %v641, %v638
        %v723 = vpack.c.b16 %v645, %v642
        %v724 = vpack.c.b16 %v646, %v643
        %v725 = vpack.c.b16 %v647, %v644
        %v726 = vpack.c.b16 %v651, %v648
        %v727 = vpack.c.b16 %v652, %v649
        %v728 = vpack.c.b16 %v653, %v650
        %v729 = vpack.c.b16 %v657, %v654
        %v730 = vpack.c.b16 %v658, %v655
        %v731 = vpack.c.b16 %v659, %v656
        %v732 = vpack.c.b16 %v663, %v660
        %v733 = vpack.c.b16 %v664, %v661
        %v734 = vpack.c.b16 %v665, %v662
        %v735 = vpack.c.b16 %v669, %v666
        %v736 = vpack.c.b16 %v670, %v667
        %v737 = vpack.c.b16 %v671, %v668
        %v738 = vpack.c.b16 %v675, %v672
        %v739 = vpack.c.b16 %v676, %v673
        %v740 = vpack.c.b16 %v677, %v674
        %v741 = vpack.c.b16 %v681, %v678
        %v742 = vpack.c.b16 %v682, %v679
        %v743 = vpack.c.b16 %v683, %v680
        %v805 = vsel %vm210, %v377, 0
        %v808 = vsel %vm210, %v380, 0
        %v811 = vsel %vm210, %v383, 0
        %v814 = vsel %vm210, %v386, 0
        %816 = vmatprep.subr.bf16.mxu0 %v685
        %817 = vmatpush1.bf16.msra.mxu0 %v684
        %818 = vmatprep.subr.bf16.mxu0 %v688
        %819 = vmatpush1.bf16.msra.mxu0 %v687
        %820 = vmatprep.subr.bf16.mxu0 %v691
        %821 = vmatpush1.bf16.msra.mxu0 %v690
        %822 = vmatprep.subr.bf16.mxu0 %v694
        %823 = vmatpush1.bf16.msra.mxu0 %v693
        %824 = vmatprep.subr.bf16.mxu0 %v697
        %825 = vmatpush1.bf16.msra.mxu0 %v696
        %826 = vmatprep.subr.bf16.mxu0 %v700
        %827 = vmatpush1.bf16.msra.mxu0 %v699
        %828 = vmatprep.subr.bf16.mxu0 %v703
        %829 = vmatpush1.bf16.msra.mxu0 %v702
        %830 = vmatprep.subr.bf16.mxu0 %v706
        %831 = vmatpush1.bf16.msra.mxu0 %v705
        %832 = vmatprep.subr.bf16.mxu0 %v709
        %833 = vmatpush1.bf16.msra.mxu0 %v708
        %834 = vmatprep.subr.bf16.mxu0 %v712
        %835 = vmatpush1.bf16.msra.mxu0 %v711
        %836 = vmatprep.subr.bf16.mxu0 %v715
        %837 = vmatpush1.bf16.msra.mxu0 %v714
        %838 = vmatprep.subr.bf16.mxu0 %v718
        %839 = vmatpush1.bf16.msra.mxu0 %v717
        %840 = vmatprep.subr.bf16.mxu0 %v721
        %841 = vmatpush1.bf16.msra.mxu0 %v720
        %842 = vmatprep.subr.bf16.mxu0 %v724
        %843 = vmatpush1.bf16.msra.mxu0 %v723
        %844 = vmatprep.subr.bf16.mxu0 %v727
        %845 = vmatpush1.bf16.msra.mxu0 %v726
        %846 = vmatprep.subr.bf16.mxu0 %v730
        %847 = vmatpush1.bf16.msra.mxu0 %v729
        %848 = vmatprep.mubr.bf16.mxu0 %v376
        %849 = vmatmul.mubr.bf16.gmra.mrb[0].mxu0 %v375
        %v850 = vpop.f32.mrb[0].mxu0
        %v851 = vadd.f32 %v472, %v850
        %v852 = vpop.f32.mrb[0].mxu0
        %v853 = vadd.f32 %v476, %v852
        %v854 = vpop.f32.mrb[0].mxu0
        %v855 = vadd.f32 %v472, %v854
        %v856 = vpop.f32.mrb[0].mxu0
        %v857 = vadd.f32 %v476, %v856
        %858 = vmatprep.mubr.bf16.mxu0 %v379
        %859 = vmatmul.mubr.bf16.gmra.mrb[0].mxu0 %v378
        %v860 = vpop.f32.mrb[0].mxu0
        %v861 = vadd.f32 %v472, %v860
        %v862 = vpop.f32.mrb[0].mxu0
        %v863 = vadd.f32 %v476, %v862
        %v864 = vpop.f32.mrb[0].mxu0
        %v865 = vadd.f32 %v472, %v864
        %v866 = vpop.f32.mrb[0].mxu0
        %v867 = vadd.f32 %v476, %v866
        %868 = vmatprep.mubr.bf16.mxu0 %v382
        %869 = vmatmul.mubr.bf16.gmra.mrb[0].mxu0 %v381
        %v870 = vpop.f32.mrb[0].mxu0
        %v871 = vadd.f32 %v472, %v870
        %v872 = vpop.f32.mrb[0].mxu0
        %v873 = vadd.f32 %v476, %v872
        %v874 = vpop.f32.mrb[0].mxu0
        %v875 = vadd.f32 %v472, %v874
        %v876 = vpop.f32.mrb[0].mxu0
        %v877 = vadd.f32 %v476, %v876
        %878 = vmatprep.mubr.bf16.mxu0 %v385
        %879 = vmatmul.mubr.bf16.gmra.mrb[0].mxu0 %v384
        %v880 = vpop.f32.mrb[0].mxu0
        %v881 = vadd.f32 %v472, %v880
        %v882 = vpop.f32.mrb[0].mxu0
        %v883 = vadd.f32 %v476, %v882
        %v884 = vpop.f32.mrb[0].mxu0
        %v885 = vadd.f32 %v472, %v884
        %v886 = vpop.f32.mrb[0].mxu0
        %v887 = vadd.f32 %v476, %v886
        %888 = vdwg.mxu0
        %889 = vmatprep.subr.bf16.mxu0 %v733
        %890 = vmatpush1.bf16.msra.mxu0 %v732
        %891 = vmatprep.subr.bf16.mxu0 %v736
        %892 = vmatpush1.bf16.msra.mxu0 %v735
        %893 = vmatprep.subr.bf16.mxu0 %v739
        %894 = vmatpush1.bf16.msra.mxu0 %v738
        %895 = vmatprep.subr.bf16.mxu0 %v742
        %896 = vmatpush1.bf16.msra.mxu0 %v741
        %897 = vmatprep.subr.bf16.mxu0 0
        %898 = vmatpush1.bf16.msra.mxu0 0
        %899 = vmatprep.subr.bf16.mxu0 0
        %900 = vmatpush1.bf16.msra.mxu0 0
        %901 = vmatprep.subr.bf16.mxu0 0
        %902 = vmatpush1.bf16.msra.mxu0 0
        %903 = vmatprep.subr.bf16.mxu0 0
        %904 = vmatpush1.bf16.msra.mxu0 0
        %905 = vmatprep.subr.bf16.mxu0 0
        %906 = vmatpush1.bf16.msra.mxu0 0
        %907 = vmatprep.subr.bf16.mxu0 0
        %908 = vmatpush1.bf16.msra.mxu0 0
        %909 = vmatprep.subr.bf16.mxu0 0
        %910 = vmatpush1.bf16.msra.mxu0 0
        %911 = vmatprep.subr.bf16.mxu0 0
        %912 = vmatpush1.bf16.msra.mxu0 0
        %913 = vmatprep.subr.bf16.mxu0 0
        %914 = vmatpush1.bf16.msra.mxu0 0
        %915 = vmatprep.subr.bf16.mxu0 0
        %916 = vmatpush1.bf16.msra.mxu0 0
        %917 = vmatprep.subr.bf16.mxu0 0
        %918 = vmatpush1.bf16.msra.mxu0 0
        %919 = vmatprep.subr.bf16.mxu0 0
        %920 = vmatpush1.bf16.msra.mxu0 0
        %921 = vmatprep.mubr.bf16.mxu0 0
        %922 = vmatmul.mubr.bf16.gmra.mrb[0].mxu0 %v805
        %v923 = vpop.f32.mrb[0].mxu0
        %v924 = vadd.f32 %v851, %v923
        %v925 = vpop.f32.mrb[0].mxu0
        %v926 = vadd.f32 %v853, %v925
        %v927 = vpop.f32.mrb[0].mxu0
        %v928 = vadd.f32 %v855, %v927
        %v929 = vpop.f32.mrb[0].mxu0
        %v930 = vadd.f32 %v857, %v929
        %931 = vmatprep.mubr.bf16.mxu0 0
        %932 = vmatmul.mubr.bf16.gmra.mrb[0].mxu0 %v808
        %v933 = vpop.f32.mrb[0].mxu0
        %v934 = vadd.f32 %v861, %v933
        %v935 = vpop.f32.mrb[0].mxu0
        %v936 = vadd.f32 %v863, %v935
        %v937 = vpop.f32.mrb[0].mxu0
        %v938 = vadd.f32 %v865, %v937
        %v939 = vpop.f32.mrb[0].mxu0
        %v940 = vadd.f32 %v867, %v939
        %941 = vmatprep.mubr.bf16.mxu0 0
        %942 = vmatmul.mubr.bf16.gmra.mrb[0].mxu0 %v811
        %v943 = vpop.f32.mrb[0].mxu0
        %v944 = vadd.f32 %v871, %v943
        %v945 = vpop.f32.mrb[0].mxu0
        %v946 = vadd.f32 %v873, %v945
        %v947 = vpop.f32.mrb[0].mxu0
        %v948 = vadd.f32 %v875, %v947
        %v949 = vpop.f32.mrb[0].mxu0
        %v950 = vadd.f32 %v877, %v949
        %951 = vmatprep.mubr.bf16.mxu0 0
        %952 = vmatmul.mubr.bf16.gmra.mrb[0].mxu0 %v814
        %v953 = vpop.f32.mrb[0].mxu0
        %v954 = vadd.f32 %v881, %v953
        %v955 = vpop.f32.mrb[0].mxu0
        %v956 = vadd.f32 %v883, %v955
        %v957 = vpop.f32.mrb[0].mxu0
        %v958 = vadd.f32 %v885, %v957
        %v959 = vpop.f32.mrb[0].mxu0
        %v960 = vadd.f32 %v887, %v959
        %961 = vdwg.mxu0
        %962 = vmatprep.subr.bf16.mxu0 0
        %963 = vmatpush1.bf16.msra.mxu0 %v686
        %964 = vmatprep.subr.bf16.mxu0 0
        %965 = vmatpush1.bf16.msra.mxu0 %v689
        %966 = vmatprep.subr.bf16.mxu0 0
        %967 = vmatpush1.bf16.msra.mxu0 %v692
        %968 = vmatprep.subr.bf16.mxu0 0
        %969 = vmatpush1.bf16.msra.mxu0 %v695
        %970 = vmatprep.subr.bf16.mxu0 0
        %971 = vmatpush1.bf16.msra.mxu0 %v698
        %972 = vmatprep.subr.bf16.mxu0 0
        %973 = vmatpush1.bf16.msra.mxu0 %v701
        %974 = vmatprep.subr.bf16.mxu0 0
        %975 = vmatpush1.bf16.msra.mxu0 %v704
        %976 = vmatprep.subr.bf16.mxu0 0
        %977 = vmatpush1.bf16.msra.mxu0 %v707
        %978 = vmatprep.subr.bf16.mxu0 0
        %979 = vmatpush1.bf16.msra.mxu0 %v710
        %980 = vmatprep.subr.bf16.mxu0 0
        %981 = vmatpush1.bf16.msra.mxu0 %v713
        %982 = vmatprep.subr.bf16.mxu0 0
        %983 = vmatpush1.bf16.msra.mxu0 %v716
        %984 = vmatprep.subr.bf16.mxu0 0
        %985 = vmatpush1.bf16.msra.mxu0 %v719
        %986 = vmatprep.subr.bf16.mxu0 0
        %987 = vmatpush1.bf16.msra.mxu0 %v722
        %988 = vmatprep.subr.bf16.mxu0 0
        %989 = vmatpush1.bf16.msra.mxu0 %v725
        %990 = vmatprep.subr.bf16.mxu0 0
        %991 = vmatpush1.bf16.msra.mxu0 %v728
        %992 = vmatprep.subr.bf16.mxu0 0
        %993 = vmatpush1.bf16.msra.mxu0 %v731
        %994 = vmatprep.mubr.bf16.mxu0 %v376
        %995 = vmatmul.mubr.bf16.gmra.mrb[0].mxu0 %v375
        %v996 = vpop.f32.mrb[0].mxu0
        %v997 = vadd.f32 %v480, %v996
        %v998 = vpop.f32.mrb[0].mxu0
        %v999 = vpop.f32.mrb[0].mxu0
        %v1000 = vadd.f32 %v480, %v999
        %v1001 = vpop.f32.mrb[0].mxu0
        %1002 = vmatprep.mubr.bf16.mxu0 %v379
        %1003 = vmatmul.mubr.bf16.gmra.mrb[0].mxu0 %v378
        %v1004 = vpop.f32.mrb[0].mxu0
        %v1005 = vadd.f32 %v480, %v1004
        %v1006 = vpop.f32.mrb[0].mxu0
        %v1007 = vpop.f32.mrb[0].mxu0
        %v1008 = vadd.f32 %v480, %v1007
        %v1009 = vpop.f32.mrb[0].mxu0
        %1010 = vmatprep.mubr.bf16.mxu0 %v382
        %1011 = vmatmul.mubr.bf16.gmra.mrb[0].mxu0 %v381
        %v1012 = vpop.f32.mrb[0].mxu0
        %v1013 = vadd.f32 %v480, %v1012
        %v1014 = vpop.f32.mrb[0].mxu0
        %v1015 = vpop.f32.mrb[0].mxu0
        %v1016 = vadd.f32 %v480, %v1015
        %v1017 = vpop.f32.mrb[0].mxu0
        %1018 = vmatprep.mubr.bf16.mxu0 %v385
        %1019 = vmatmul.mubr.bf16.gmra.mrb[0].mxu0 %v384
        %v1020 = vpop.f32.mrb[0].mxu0
        %v1021 = vadd.f32 %v480, %v1020
        %v1022 = vpop.f32.mrb[0].mxu0
        %v1023 = vpop.f32.mrb[0].mxu0
        %v1024 = vadd.f32 %v480, %v1023
        %v1025 = vpop.f32.mrb[0].mxu0
        %1026 = vdwg.mxu0
        %1027 = vmatprep.subr.bf16.mxu0 0
        %1028 = vmatpush1.bf16.msra.mxu0 %v734
        %1029 = vmatprep.subr.bf16.mxu0 0
        %1030 = vmatpush1.bf16.msra.mxu0 %v737
        %1031 = vmatprep.subr.bf16.mxu0 0
        %1032 = vmatpush1.bf16.msra.mxu0 %v740
        %1033 = vmatprep.subr.bf16.mxu0 0
        %1034 = vmatpush1.bf16.msra.mxu0 %v743
        %1035 = vmatprep.subr.bf16.mxu0 0
        %1036 = vmatpush1.bf16.msra.mxu0 0
        %1037 = vmatprep.subr.bf16.mxu0 0
        %1038 = vmatpush1.bf16.msra.mxu0 0
        %1039 = vmatprep.subr.bf16.mxu0 0
        %1040 = vmatpush1.bf16.msra.mxu0 0
        %1041 = vmatprep.subr.bf16.mxu0 0
        %1042 = vmatpush1.bf16.msra.mxu0 0
        %1043 = vmatprep.subr.bf16.mxu0 0
        %1044 = vmatpush1.bf16.msra.mxu0 0
        %1045 = vmatprep.subr.bf16.mxu0 0
        %1046 = vmatpush1.bf16.msra.mxu0 0
        %1047 = vmatprep.subr.bf16.mxu0 0
        %1048 = vmatpush1.bf16.msra.mxu0 0
        %1049 = vmatprep.subr.bf16.mxu0 0
        %1050 = vmatpush1.bf16.msra.mxu0 0
        %1051 = vmatprep.subr.bf16.mxu0 0
        %1052 = vmatpush1.bf16.msra.mxu0 0
        %1053 = vmatprep.subr.bf16.mxu0 0
        %1054 = vmatpush1.bf16.msra.mxu0 0
        %1055 = vmatprep.subr.bf16.mxu0 0
        %1056 = vmatpush1.bf16.msra.mxu0 0
        %1057 = vmatprep.subr.bf16.mxu0 0
        %1058 = vmatpush1.bf16.msra.mxu0 0
        %1059 = vmatprep.mubr.bf16.mxu0 0
        %1060 = vmatmul.mubr.bf16.gmra.mrb[0].mxu0 %v805
        %v1061 = vpop.f32.mrb[0].mxu0
        %v1062 = vadd.f32 %v997, %v1061
        %v1063 = vpop.f32.mrb[0].mxu0
        %v1064 = vpop.f32.mrb[0].mxu0
        %v1065 = vadd.f32 %v1000, %v1064
        %v1066 = vpop.f32.mrb[0].mxu0
        %1067 = vmatprep.mubr.bf16.mxu0 0
        %1068 = vmatmul.mubr.bf16.gmra.mrb[0].mxu0 %v808
        %v1069 = vpop.f32.mrb[0].mxu0
        %v1070 = vadd.f32 %v1005, %v1069
        %v1071 = vpop.f32.mrb[0].mxu0
        %v1072 = vpop.f32.mrb[0].mxu0
        %v1073 = vadd.f32 %v1008, %v1072
        %v1074 = vpop.f32.mrb[0].mxu0
        %1075 = vmatprep.mubr.bf16.mxu0 0
        %1076 = vmatmul.mubr.bf16.gmra.mrb[0].mxu0 %v811
        %v1077 = vpop.f32.mrb[0].mxu0
        %v1078 = vadd.f32 %v1013, %v1077
        %v1079 = vpop.f32.mrb[0].mxu0
        %v1080 = vpop.f32.mrb[0].mxu0
        %v1081 = vadd.f32 %v1016, %v1080
        %v1082 = vpop.f32.mrb[0].mxu0
        %1083 = vmatprep.mubr.bf16.mxu0 0
        %1084 = vmatmul.mubr.bf16.gmra.mrb[0].mxu0 %v814
        %v1085 = vpop.f32.mrb[0].mxu0
        %v1086 = vadd.f32 %v1021, %v1085
        %v1087 = vpop.f32.mrb[0].mxu0
        %v1088 = vpop.f32.mrb[0].mxu0
        %v1089 = vadd.f32 %v1024, %v1088
        %v1090 = vpop.f32.mrb[0].mxu0
        %1091 = vdwg.mxu0
        %v1092 = vmax.f32 %v924, %v926
        %v1093 = vmax.f32 %v928, %v930
        %v1094 = vmax.f32 %v934, %v936
        %v1095 = vmax.f32 %v938, %v940
        %v1096 = vmax.f32 %v944, %v946
        %v1097 = vmax.f32 %v948, %v950
        %v1098 = vmax.f32 %v954, %v956
        %v1099 = vmax.f32 %v958, %v960
        %v1100 = vmax.f32 %v1092, %v1062
        %v1101 = vmax.f32 %v1093, %v1065
        %v1102 = vmax.f32 %v1094, %v1070
        %v1103 = vmax.f32 %v1095, %v1073
        %v1104 = vmax.f32 %v1096, %v1078
        %v1105 = vmax.f32 %v1097, %v1081
        %v1106 = vmax.f32 %v1098, %v1086
        %v1107 = vmax.f32 %v1099, %v1089
        %v1108 = vtanh.pop %v1100
        %v1109 = vtanh.pop %v1101
        %v1110 = vtanh.pop %v1102
        %v1111 = vtanh.pop %v1103
        %v1112 = vtanh.pop %v1104
        %v1113 = vtanh.pop %v1105
        %v1114 = vtanh.pop %v1106
        %v1115 = vtanh.pop %v1107
        %1116 = vst [vmem:[%s204] sm:$0xff] %v1108
        %1117 = vst [vmem:[%s204 + $0x8] sm:$0xff] %v1109
        %s1118 = scalar_lea.vmem %s204, 16 [#allocation8]
        %1119 = vst [vmem:[%s1118] sm:$0xff] %v1110
        %1120 = vst [vmem:[%s1118 + $0x8] sm:$0xff] %v1111
        %s1121 = scalar_lea.vmem %s204, 32 [#allocation8]
        %1122 = vst [vmem:[%s1121] sm:$0xff] %v1112
        %1123 = vst [vmem:[%s1121 + $0x8] sm:$0xff] %v1113
        %s1124 = scalar_lea.vmem %s204, 48 [#allocation8]
        %1125 = vst [vmem:[%s1124] sm:$0xff] %v1114
        %1126 = vst [vmem:[%s1124 + $0x8] sm:$0xff] %v1115
        %s1127 = sand.u32 %s97, 1
        %s1128 = scalar_lea.sflag [#allocation5], %s1127
        %s1129 = sand.u32 %s97, 1
        %s1130 = smul.addr %s1129, 64
        %s1131 = scalar_lea.vmem [#allocation8], %s1130
        // Predicated region
        $region41: #{tpu_custom_call.1} parent=31 // pred_check
          %p1132 = pneg %p107
        $region42: #{tpu_custom_call.1} parent=31 // pred_check_branch
          %1134 = sbr.rel (%p1132) target = $region44
        $region43: #{tpu_custom_call.1} parent=31 // pred_region
          %s1135 = smul.u32 4, %s21
          %s1137 = ssub.s32 1024, 1024
          %1138 = vsyncadd %s1128, %s1137
          %s1139 = smul.addr %s1135, 2
          %s1140 = smul.addr %s1139, 128
          %s1141 = scalar_lea.hbm %s3, %s1140
          %s1142 = sshll.u32 %s1131, 4
          %s1143 = int_to_ptr.vmem [resolvable:$true] %s1142
          %1148 = dma.vmem_to_hbm [thread:$0]  %s1143, 1024, %s1141, %s1128, 128, 128, 8
        $region44: #{tpu_custom_call.1} parent=31 // pred_fallthru
          _
      $region32: #{tpu_custom_call.1} parent=5 // pred_fallthru
        _
      %p1149 = scmp.le.s32.totalorder 2, %s16
      // Predicated region
      $region45: #{tpu_custom_call.1} parent=5 // pred_check
        %p1150 = pneg %p1149
      $region46: #{tpu_custom_call.1} parent=5 // pred_check_branch
        %1152 = sbr.rel (%p1150) target = $region48
      $region47: #{tpu_custom_call.1} parent=5 // pred_region
        %s1153 = ssub.s32 %s16, 2
        // Predicated region
        $region49: #{tpu_custom_call.1} parent=47 // pred_check
          %p1154 = pneg %p113
        $region50: #{tpu_custom_call.1} parent=47 // pred_check_branch
          %1156 = sbr.rel (%p1154) target = $region52
        $region51: #{tpu_custom_call.1} parent=47 // pred_region
          %s1157 = sand.u32 %s98, 1
          %s1158 = scalar_lea.sflag [#allocation5], %s1157
          %s1159 = sand.u32 %s98, 1
          %s1160 = smul.addr %s1159, 64
          %s1161 = scalar_lea.vmem [#allocation8], %s1160
          %1162 = dma.done %s1158, 1024
        $region52: #{tpu_custom_call.1} parent=47 // pred_fallthru
          _
      $region48: #{tpu_custom_call.1} parent=5 // pred_fallthru
        _
    $region6: #{tpu_custom_call.1} parent=1 // loop_footer
      %s20 = sadd.s32 1, %s16
    $region7: #{tpu_custom_call.1} parent=1 // loop_footer_branch
      %15 = sbr.rel target = $region3
    $region8: #{tpu_custom_call.1} parent=1 // loop_exit
      _
    %1163 = vsyncpa [#allocation4], 1
    %s1164 = scalar_lea.sflag [#allocation4], 1
    %1165 = vsyncpa %s1164, 1
    %1166 = vsyncpa [#allocation7], 1
    %1167 = vsyncpa [#allocation5], 1
    %s1168 = scalar_lea.sflag [#allocation5], 1
    %1169 = vsyncpa %s1168, 1

</llo_original>
